<compile_context>
chip_gen: v7x
topology: tpu7x:2x2x1
jax: 0.10.0
libtpu: 0.0.40
codegen_flags: <defaults>
</compile_context>

<pallas_src>
import functools

import jax
import jax.numpy as jnp
from jax.experimental import pallas as pl
from jax.experimental.pallas import tpu as pltpu

LANE_WIDTH = 512  # lane-dense slab width (multiple of 128)


def _cdiv(a, b):
    return -(-a // b)


def _pointwise_sums_kernel(x_ref, out_ref, acc_pos_ref, acc_neg_ref, *,
                           gamma, n_pos, n_total, tile_rows, lane_width):
    """One pass over the packed [pos | neg | zero-pad] slab.

    Grid: (chunk ["parallel"], row-tile within chunk ["arbitrary" reduction]).
    out_ref:     (16, lane_width) per-chunk partials; rows 0-7 = pos, 8-15 = neg.
    acc_*_ref:   (8, lane_width) f32 VMEM accumulators, persistent over the sweep.
    """
    c = pl.program_id(0)
    t = pl.program_id(1)
    tpc = pl.num_programs(1)

    @pl.when(t == 0)
    def _init():
        acc_pos_ref[...] = jnp.zeros_like(acc_pos_ref)
        acc_neg_ref[...] = jnp.zeros_like(acc_neg_ref)

    x = x_ref[...].astype(jnp.float32)                      # (tile_rows, lane)

    # Flat element index of every lane in the packed slab: decides pos vs neg
    # vs padding. Padding garbage never reaches the accumulators because the
    # post-loss selects exclude it (sigmoid/log of pad values are finite).
    row_start = (c * tpc + t) * tile_rows
    rows = row_start + jax.lax.broadcasted_iota(
        jnp.int32, (tile_rows, lane_width), 0)
    lanes = jax.lax.broadcasted_iota(jnp.int32, (tile_rows, lane_width), 1)
    flat = rows * lane_width + lanes
    is_pos = flat < n_pos
    is_neg = jnp.logical_and(flat >= n_pos, flat < n_total)

    # Negative scores contribute -log(gamma + sigmoid(-x)): flip their sign.
    xs = jnp.where(is_pos, x, -x)
    # Exact reference math (stable exp-based sigmoid keeps the gamma clamp).
    loss = -jnp.log(gamma + jax.nn.sigmoid(xs))

    # Fold the tile down to one vreg-high (8, lane) slab per stream: pure VPU
    # vreg adds, keeps the running sums in ~2 vregs of VMEM.
    g = tile_rows // 8
    pos_part = jnp.where(is_pos, loss, 0.0).reshape(g, 8, lane_width).sum(axis=0)
    neg_part = jnp.where(is_neg, loss, 0.0).reshape(g, 8, lane_width).sum(axis=0)
    acc_pos_ref[...] += pos_part
    acc_neg_ref[...] += neg_part

    @pl.when(t == tpc - 1)
    def _finalize():
        # Lane-dense (16, lane) store, written once per chunk.
        out_ref[0:8, :] = acc_pos_ref[...]
        out_ref[8:16, :] = acc_neg_ref[...]


def _fused_pos_neg_sums(pos_score, neg_scores, *, gamma,
                        target_block_bytes=2 * 1024 * 1024):
    """Returns (S_pos, S_neg) global sums via one lane-dense Pallas pass."""
    assert pos_score.ndim == 2 and neg_scores.ndim == 2
    dt = jnp.result_type(pos_score.dtype, neg_scores.dtype)
    itemsize = jnp.dtype(dt).itemsize
    sub = max(8, 32 // itemsize)          # sublane multiple: 8 f32 / 16 bf16

    n_pos = pos_score.size
    n_neg = neg_scores.size
    n_total = n_pos + n_neg
    lane_width = LANE_WIDTH

    # Tile sizing: ~target_block_bytes per input buffer (double-buffered by the
    # BlockSpec pipeline), clamped so a tile never exceeds the whole slab.
    rows_raw = _cdiv(n_total, lane_width)
    group_bytes = sub * lane_width * itemsize
    budget_groups = max(1, target_block_bytes // group_bytes)
    tile_rows = sub * min(budget_groups, _cdiv(rows_raw, sub))
    tiles_total = _cdiv(rows_raw, tile_rows)

    # 2-wide "parallel" chunk axis whenever there is >= 2 tiles of work so both
    # v7x TensorCores run; tiles rounded up to even, the padded extra tile is a
    # masked no-op. Extent 1 only for trivially small inputs.
    n_chunks = 1 if tiles_total == 1 else 2
    tiles_per_chunk = _cdiv(tiles_total, n_chunks)
    rows_padded = n_chunks * tiles_per_chunk * tile_rows
    pad = rows_padded * lane_width - n_total

    # Lane repack: [pos | neg | zeros] as one contiguous (rows_padded, 512)
    # slab. One XLA concatenate (cheap, mem-bound) buys full-lane EUP/VPU
    # utilization and contiguous DMA inside the kernel.
    x = jnp.concatenate([
        pos_score.reshape(-1).astype(dt),
        neg_scores.reshape(-1).astype(dt),
        jnp.zeros((pad,), dt),
    ]).reshape(rows_padded, lane_width)

    kernel = functools.partial(
        _pointwise_sums_kernel, gamma=gamma, n_pos=n_pos, n_total=n_total,
        tile_rows=tile_rows, lane_width=lane_width)

    elems = rows_padded * lane_width
    partials = pl.pallas_call(
        kernel,
        out_shape=jax.ShapeDtypeStruct((n_chunks * 16, lane_width), jnp.float32),
        grid_spec=pltpu.PrefetchScalarGridSpec(
            num_scalar_prefetch=0,
            grid=(n_chunks, tiles_per_chunk),
            in_specs=[
                pl.BlockSpec(
                    (tile_rows, lane_width),
                    lambda c, t, _tpc=tiles_per_chunk: (c * _tpc + t, 0)),
            ],
            out_specs=pl.BlockSpec((16, lane_width), lambda c, t: (c, 0)),
            scratch_shapes=[
                pltpu.VMEM((8, lane_width), jnp.float32),   # pos accumulator
                pltpu.VMEM((8, lane_width), jnp.float32),   # neg accumulator
            ],
        ),
        compiler_params=pltpu.CompilerParams(
            dimension_semantics=("parallel", "arbitrary")),
        cost_estimate=pl.CostEstimate(
            flops=10 * elems,
            transcendentals=3 * elems,
            bytes_accessed=elems * itemsize + n_chunks * 16 * lane_width * 4),
    )(x)

    # Tiny final fold of the per-lane partials in plain XLA.
    partials = partials.reshape(n_chunks, 2, 8, lane_width)
    s_pos = jnp.sum(partials[:, 0])
    s_neg = jnp.sum(partials[:, 1])
    return s_pos, s_neg


def pointwise_loss(pos_score, neg_scores, gamma=1e-10, alpha=None,
                   _target_block_bytes=2 * 1024 * 1024):
    """Scalar PointWiseLoss, matching the PyTorch module's forward."""
    assert pos_score.ndim == 2 and neg_scores.ndim == 2
    b, p = pos_score.shape
    bn, n = neg_scores.shape
    assert b == bn, "batch dims must match"

    s_pos, s_neg = _fused_pos_neg_sums(
        pos_score, neg_scores, gamma=gamma,
        target_block_bytes=_target_block_bytes)

    if alpha is None:
        # mean over (B, P) of (pos_loss + sum_n neg_loss) / (P + N)
        return (s_pos + p * s_neg) / jnp.float32(b * p * (p + n))
    else:
        # mean over (B, P) of alpha*pos_loss + (1-alpha)*mean_n neg_loss
        return (alpha * s_pos / jnp.float32(b * p)
                + (1.0 - alpha) * s_neg / jnp.float32(b * n))


class PointWiseLossPallas:
    """Module-like wrapper mirroring the PyTorch PointWiseLoss."""

    def __init__(self, alpha=None):
        self.gamma = 1e-10
        self.alpha = alpha

    def __call__(self, pos_score, neg_scores, epoch=None):
        return pointwise_loss(pos_score, neg_scores,
                              gamma=self.gamma, alpha=self.alpha)


if __name__ == "__main__":
    def reference(pos, neg, gamma, alpha):
        pos_loss = -jnp.log(gamma + jax.nn.sigmoid(pos))
        if alpha is None:
            neg_loss = -jnp.sum(jnp.log(gamma + jax.nn.sigmoid(-neg)),
                                axis=-1, keepdims=True)
            loss = (pos_loss + neg_loss) / (pos.shape[1] + neg.shape[1])
        else:
            neg_loss = -jnp.mean(jnp.log(gamma + jax.nn.sigmoid(-neg)),
                                 axis=-1, keepdims=True)
            loss = alpha * pos_loss + (1 - alpha) * neg_loss
        return jnp.mean(loss)

    key = jax.random.PRNGKey(0)
    k1, k2, k3, k4 = jax.random.split(key, 4)

    # Check 1: small canonical shapes, default tiling, both alpha branches.
    pos = jax.random.normal(k1, (8, 4), jnp.float32)
    neg = jax.random.normal(k2, (8, 32), jnp.float32)
    for alpha in (None, 0.5):
        module = PointWiseLossPallas(alpha=alpha)
        out = module(pos, neg)
        jax.block_until_ready(out)
        ref = reference(pos, neg, 1e-10, alpha)
        assert jnp.allclose(out, ref, atol=2e-5, rtol=2e-5), (alpha, out, ref)

    # Check 2: larger ragged shapes + tiny block target to exercise multi-tile
    # pipelining, the flat-index tail mask, the pos/neg boundary inside a tile,
    # multi-step accumulation, and the 2-chunk "parallel" split.
    pos2 = jax.random.normal(k3, (60, 40), jnp.float32)
    neg2 = jax.random.normal(k4, (60, 200), jnp.float32)
    for alpha in (None, 0.3):
        out = pointwise_loss(pos2, neg2, gamma=1e-10, alpha=alpha,
                             _target_block_bytes=8192)
        jax.block_until_ready(out)
        ref = reference(pos2, neg2, 1e-10, alpha)
        assert jnp.allclose(out, ref, atol=2e-5, rtol=2e-5), (alpha, out, ref)

    print("KERNEL_OK")
</pallas_src>

<mosaic_0001>
module attributes {stable_mosaic.version = 11 : i64} {
  func.func @_pointwise_sums_kernel(%arg0: i32, %arg1: i32, %arg2: memref<8x512xf32, #tpu.memory_space<vmem>>, %arg3: memref<16x512xf32, #tpu.memory_space<vmem>>, %arg4: memref<8x512xf32, #tpu.memory_space<vmem>>, %arg5: memref<8x512xf32, #tpu.memory_space<vmem>>) attributes {dimension_semantics = [#tpu.dimension_semantics<parallel>, #tpu.dimension_semantics<arbitrary>], iteration_bounds = array<i64: 1, 1>, scalar_prefetch = 0 : i64, scratch_operands = 2 : i64, tpu.core_type = #tpu.core_type<tc>, window_params = [{transform_indices = @transform_0, window_bounds = array<i64: 8, 512>}, {transform_indices = @transform_1, window_bounds = array<i64: 16, 512>}]} {
    %c0_i32 = arith.constant 0 : i32
    %0 = arith.cmpi eq, %arg1, %c0_i32 : i32
    %1 = arith.extui %0 : i1 to i32
    %c0_i32_0 = arith.constant 0 : i32
    %2 = arith.cmpi ne, %1, %c0_i32_0 : i32
    scf.if %2 {
      %cst_20 = arith.constant 0.000000e+00 : f32
      %51 = vector.broadcast %cst_20 : f32 to vector<8x512xf32>
      %c0_21 = arith.constant 0 : index
      %c0_22 = arith.constant 0 : index
      %52 = vector.load %arg4[%c0_21, %c0_22] : memref<8x512xf32, #tpu.memory_space<vmem>>, vector<8x512xf32>
      tpu.vector_store %arg4[%c0_21, %c0_22], %51 {strides = array<i32>} : memref<8x512xf32, #tpu.memory_space<vmem>>, vector<8x512xf32>,
      %cst_23 = arith.constant 0.000000e+00 : f32
      %53 = vector.broadcast %cst_23 : f32 to vector<8x512xf32>
      %c0_24 = arith.constant 0 : index
      %c0_25 = arith.constant 0 : index
      %54 = vector.load %arg5[%c0_24, %c0_25] : memref<8x512xf32, #tpu.memory_space<vmem>>, vector<8x512xf32>
      tpu.vector_store %arg5[%c0_24, %c0_25], %53 {strides = array<i32>} : memref<8x512xf32, #tpu.memory_space<vmem>>, vector<8x512xf32>,
    } else {
    }
    %c0 = arith.constant 0 : index
    %c0_1 = arith.constant 0 : index
    %3 = vector.load %arg2[%c0, %c0_1] : memref<8x512xf32, #tpu.memory_space<vmem>>, vector<8x512xf32>
    %c1_i32 = arith.constant 1 : i32
    %4 = arith.muli %arg0, %c1_i32 : i32
    %5 = arith.addi %4, %arg1 : i32
    %c8_i32 = arith.constant 8 : i32
    %6 = arith.muli %5, %c8_i32 : i32
    %7 = tpu.iota {dimensions = array<i32: 0>} : vector<8x512xi32>
    %8 = vector.broadcast %6 : i32 to vector<8x512xi32>
    %9 = arith.addi %8, %7 : vector<8x512xi32>
    %10 = tpu.iota {dimensions = array<i32: 1>} : vector<8x512xi32>
    %c512_i32 = arith.constant 512 : i32
    %11 = vector.broadcast %c512_i32 : i32 to vector<8x512xi32>
    %12 = arith.muli %9, %11 : vector<8x512xi32>
    %13 = arith.addi %12, %10 : vector<8x512xi32>
    %c32_i32 = arith.constant 32 : i32
    %14 = vector.broadcast %c32_i32 : i32 to vector<8x512xi32>
    %15 = arith.cmpi slt, %13, %14 : vector<8x512xi32>
    %c32_i32_2 = arith.constant 32 : i32
    %16 = vector.broadcast %c32_i32_2 : i32 to vector<8x512xi32>
    %17 = arith.cmpi sge, %13, %16 : vector<8x512xi32>
    %c288_i32 = arith.constant 288 : i32
    %18 = vector.broadcast %c288_i32 : i32 to vector<8x512xi32>
    %19 = arith.cmpi slt, %13, %18 : vector<8x512xi32>
    %20 = arith.andi %17, %19 : vector<8x512xi1>
    %cst = arith.constant 0.000000e+00 : f32
    %21 = vector.broadcast %cst : f32 to vector<8x512xf32>
    %22 = arith.subf %21, %3 : vector<8x512xf32>
    %23 = arith.select %15, %3, %22 : vector<8x512xi1>, vector<8x512xf32>
    %24 = arith.negf %23 : vector<8x512xf32>
    %25 = math.exp %24 : vector<8x512xf32>
    %cst_3 = arith.constant 1.000000e+00 : f32
    %26 = vector.broadcast %cst_3 : f32 to vector<8x512xf32>
    %27 = arith.addf %26, %25 : vector<8x512xf32>
    %28 = arith.divf %26, %27 : vector<8x512xf32>
    %cst_4 = arith.constant 1.000000e-10 : f32
    %29 = vector.broadcast %cst_4 : f32 to vector<8x512xf32>
    %30 = arith.addf %29, %28 : vector<8x512xf32>
    %31 = math.log %30 : vector<8x512xf32>
    %cst_5 = arith.constant 0.000000e+00 : f32
    %32 = vector.broadcast %cst_5 : f32 to vector<8x512xf32>
    %33 = arith.subf %32, %31 : vector<8x512xf32>
    %cst_6 = arith.constant 0.000000e+00 : f32
    %34 = vector.broadcast %cst_6 : f32 to vector<8x512xf32>
    %35 = arith.select %15, %33, %34 : vector<8x512xi1>, vector<8x512xf32>
    %36 = vector.shape_cast %35 : vector<8x512xf32> to vector<1x8x512xf32>
    %cst_7 = arith.constant dense<0.000000e+00> : vector<8x512xf32>
    %37 = vector.multi_reduction <add>, %36, %cst_7 [0] : vector<1x8x512xf32> to vector<8x512xf32>
    %cst_8 = arith.constant 0.000000e+00 : f32
    %38 = vector.broadcast %cst_8 : f32 to vector<8x512xf32>
    %39 = arith.select %20, %33, %38 : vector<8x512xi1>, vector<8x512xf32>
    %40 = vector.shape_cast %39 : vector<8x512xf32> to vector<1x8x512xf32>
    %cst_9 = arith.constant dense<0.000000e+00> : vector<8x512xf32>
    %41 = vector.multi_reduction <add>, %40, %cst_9 [0] : vector<1x8x512xf32> to vector<8x512xf32>
    %c0_10 = arith.constant 0 : index
    %c0_11 = arith.constant 0 : index
    %42 = vector.load %arg4[%c0_10, %c0_11] : memref<8x512xf32, #tpu.memory_space<vmem>>, vector<8x512xf32>
    %43 = arith.addf %42, %37 : vector<8x512xf32>
    %c0_12 = arith.constant 0 : index
    %c0_13 = arith.constant 0 : index
    %44 = vector.load %arg4[%c0_12, %c0_13] : memref<8x512xf32, #tpu.memory_space<vmem>>, vector<8x512xf32>
    tpu.vector_store %arg4[%c0_12, %c0_13], %43 {strides = array<i32>} : memref<8x512xf32, #tpu.memory_space<vmem>>, vector<8x512xf32>,
    %c0_14 = arith.constant 0 : index
    %c0_15 = arith.constant 0 : index
    %45 = vector.load %arg5[%c0_14, %c0_15] : memref<8x512xf32, #tpu.memory_space<vmem>>, vector<8x512xf32>
    %46 = arith.addf %45, %41 : vector<8x512xf32>
    %c0_16 = arith.constant 0 : index
    %c0_17 = arith.constant 0 : index
    %47 = vector.load %arg5[%c0_16, %c0_17] : memref<8x512xf32, #tpu.memory_space<vmem>>, vector<8x512xf32>
    tpu.vector_store %arg5[%c0_16, %c0_17], %46 {strides = array<i32>} : memref<8x512xf32, #tpu.memory_space<vmem>>, vector<8x512xf32>,
    %c0_i32_18 = arith.constant 0 : i32
    %48 = arith.cmpi eq, %arg1, %c0_i32_18 : i32
    %49 = arith.extui %48 : i1 to i32
    %c0_i32_19 = arith.constant 0 : i32
    %50 = arith.cmpi ne, %49, %c0_i32_19 : i32
    scf.if %50 {
      %c0_20 = arith.constant 0 : index
      %c0_21 = arith.constant 0 : index
      %51 = vector.load %arg4[%c0_20, %c0_21] : memref<8x512xf32, #tpu.memory_space<vmem>>, vector<8x512xf32>
      %c0_22 = arith.constant 0 : index
      %c0_23 = arith.constant 0 : index
      %52 = vector.load %arg3[%c0_22, %c0_23] : memref<16x512xf32, #tpu.memory_space<vmem>>, vector<8x512xf32>
      tpu.vector_store %arg3[%c0_22, %c0_23], %51 {strides = array<i32>} : memref<16x512xf32, #tpu.memory_space<vmem>>, vector<8x512xf32>,
      %c0_24 = arith.constant 0 : index
      %c0_25 = arith.constant 0 : index
      %53 = vector.load %arg5[%c0_24, %c0_25] : memref<8x512xf32, #tpu.memory_space<vmem>>, vector<8x512xf32>
      %c8 = arith.constant 8 : index
      %c0_26 = arith.constant 0 : index
      %54 = vector.load %arg3[%c8, %c0_26] : memref<16x512xf32, #tpu.memory_space<vmem>>, vector<8x512xf32>
      tpu.vector_store %arg3[%c8, %c0_26], %53 {strides = array<i32>} : memref<16x512xf32, #tpu.memory_space<vmem>>, vector<8x512xf32>,
    } else {
    }
    return
  }
  func.func @transform_0(%arg0: i32, %arg1: i32) -> (i32, i32) {
    %c1_i32 = arith.constant 1 : i32
    %0 = arith.muli %arg0, %c1_i32 : i32
    %1 = arith.addi %0, %arg1 : i32
    %c0_i32 = arith.constant 0 : i32
    %c0_i32_0 = arith.constant 0 : i32
    return %1, %c0_i32 : i32, i32
  }
  func.func @transform_1(%arg0: i32, %arg1: i32) -> (i32, i32) {
    %c0_i32 = arith.constant 0 : i32
    %c0_i32_0 = arith.constant 0 : i32
    return %arg0, %c0_i32 : i32, i32
  }
}

</mosaic_0001>

<llo_original>
// kernel: tpu_custom_call.1
$region0: #{tpu_custom_call.1}
  #allocation0 [shape = 'u32[]', space=smem, size = 0x4, offset = 0x4, fixed_abs, tag = 'smem constant byte address 0x4 - core index']
  #allocation1 [shape = 'u32[144,128]{1,0:T(1,128)}', space=vmem, size = 0x12000, scoped, tag = 'internal scratch']
  #allocation2 [shape = 'f32[8,512]{1,0:T(8,128)}', space=vmem, size = 0x4000, scoped, tag = 'scratch operand']
  #allocation3 [shape = 'f32[8,512]{1,0:T(8,128)}', space=vmem, size = 0x4000, scoped, tag = 'scratch operand']
  %s0 = inlined_call_operand.hbm [shape: f32[8,512], index: 0, kind: input, shape index: {}]
  %s1 = inlined_call_operand.hbm [shape: f32[16,512], index: 1, kind: output, shape index: {}]
  %s2 = sld [smem:[#allocation0]]
  $region26: #{tpu_custom_call.1} parent=0
    _
  %s4 = ssub.s32 1, %s2
  %s5 = scalar_select 0, %s4, %s2
  $region1: #{tpu_custom_call.1} parent=0
    #allocation4 [shape = 'u8[16384]{0}', space=vmem, size = 0x4000, scoped, tag = 'input window, operand 0, single buffered']
    #allocation5 [shape = 's32[1]{0}', space=sflag, size = 0x4, scoped, tag = 'scoped memory for tpu_custom_call.1']
    #allocation6 [shape = 's32[1]{0}', space=sflag, size = 0x4, scoped, tag = 'scoped memory for tpu_custom_call.1']
    #allocation7 [shape = 'u8[32768]{0}', space=vmem, size = 0x8000, scoped, tag = 'output window, operand 0, single buffered']
    %6 = vsyncpa [#allocation5], 0
    %7 = vsyncpa [#allocation6], 0
    // Predicated region
    $region2: #{tpu_custom_call.1} parent=1 // pred_check
      _
    $region3: #{tpu_custom_call.1} parent=1 // pred_check_branch
      %9 = sbr.rel (0) target = $region5
    $region4: #{tpu_custom_call.1} parent=1 // pred_region
      %s10 = sadd.s32 0, 0
      %s12 = ssub.s32 512, 512
      %13 = vsyncadd [#allocation5], %s12
      %s14 = smul.addr %s10, 4
      %s15 = smul.addr %s14, 128
      %s16 = scalar_lea.hbm %s0, %s15
      %s18 = sshll.u32 [#allocation4], 4
      %s19 = int_to_ptr.vmem [resolvable:$true] %s18
      %21 = dma.hbm_to_vmem [thread:$0]  %s16, 512, %s19, [#allocation5]
    $region5: #{tpu_custom_call.1} parent=1 // pred_fallthru
      _
    // Predicated region
    $region6: #{tpu_custom_call.1} parent=1 // pred_check
      _
    $region7: #{tpu_custom_call.1} parent=1 // pred_check_branch
      %23 = sbr.rel (0) target = $region9
    $region8: #{tpu_custom_call.1} parent=1 // pred_region
      %24 = dma.done [#allocation5], 512
    $region9: #{tpu_custom_call.1} parent=1 // pred_fallthru
      _
    %s25 = sadd.s32 0, 0
    %p26 = scmp.eq.s32.totalorder 0, 0
    // Predicated region
    $region10: #{tpu_custom_call.1} parent=1 // pred_check
      %p27 = pneg %p26
    $region11: #{tpu_custom_call.1} parent=1 // pred_check_branch
      %29 = sbr.rel (%p27) target = $region13
    $region12: #{tpu_custom_call.1} parent=1 // pred_region
      %30 = vst [vmem:[#allocation2] sm:$0xff] 0.0
      %31 = vst [vmem:[#allocation2 + $0x8] sm:$0xff] 0.0
      %32 = vst [vmem:[#allocation2 + $0x10] sm:$0xff] 0.0
      %33 = vst [vmem:[#allocation2 + $0x18] sm:$0xff] 0.0
      %34 = vst [vmem:[#allocation3] sm:$0xff] 0.0
      %35 = vst [vmem:[#allocation3 + $0x8] sm:$0xff] 0.0
      %36 = vst [vmem:[#allocation3 + $0x10] sm:$0xff] 0.0
      %37 = vst [vmem:[#allocation3 + $0x18] sm:$0xff] 0.0
    $region13: #{tpu_custom_call.1} parent=1 // pred_fallthru
      _
    %v38 = vld [vmem:[#allocation4] sm:$0xff]
    %v39 = vld [vmem:[#allocation4 + $0x8] sm:$0xff]
    %v40 = vld [vmem:[#allocation4 + $0x10] sm:$0xff]
    %v41 = vld [vmem:[#allocation4 + $0x18] sm:$0xff]
    %s42 = sadd.s32 0, 0
    %s43 = smul.u32 %s42, 8
    %v44 = vlaneseq
    %v45 = vshrl.u32 %v44, 7
    %v46 = vstv %s43
    %v47 = vadd.s32 %v46, %v45
    %v48 = vlaneseq
    %v49 = vand.u32 %v48, 127
    %v50 = vadd.s32 %v49, 128
    %v51 = vadd.s32 %v49, 256
    %v52 = vadd.s32 %v49, 384
    %v53 = vmul.u32 %v47, 512
    %v54 = vadd.s32 %v53, %v49
    %v55 = vadd.s32 %v53, %v50
    %v56 = vadd.s32 %v53, %v51
    %v57 = vadd.s32 %v53, %v52
    %vm58 = vcmp.lt.s32.totalorder %v54, 32
    %vm59 = vcmp.lt.s32.totalorder %v55, 32
    %vm60 = vcmp.lt.s32.totalorder %v56, 32
    %vm61 = vcmp.lt.s32.totalorder %v57, 32
    %vm62 = vcmp.ge.s32.totalorder %v54, 32
    %vm63 = vcmp.ge.s32.totalorder %v55, 32
    %vm64 = vcmp.ge.s32.totalorder %v56, 32
    %vm65 = vcmp.ge.s32.totalorder %v57, 32
    %vm66 = vcmp.lt.s32.totalorder %v54, 288
    %vm67 = vcmp.lt.s32.totalorder %v55, 288
    %vm68 = vcmp.lt.s32.totalorder %v56, 288
    %vm69 = vcmp.lt.s32.totalorder %v57, 288
    %vm70 = vmand %vm62, %vm66
    %vm71 = vmand %vm63, %vm67
    %vm72 = vmand %vm64, %vm68
    %vm73 = vmand %vm65, %vm69
    %v74 = vsub.f32 0.0, %v38
    %v75 = vsub.f32 0.0, %v39
    %v76 = vsub.f32 0.0, %v40
    %v77 = vsub.f32 0.0, %v41
    %v78 = vsel %vm58, %v38, %v74
    %v79 = vsel %vm59, %v39, %v75
    %v80 = vsel %vm60, %v40, %v76
    %v81 = vsel %vm61, %v41, %v77
    %v82 = vxor.u32 %v78, 2147483648
    %v83 = vxor.u32 %v79, 2147483648
    %v84 = vxor.u32 %v80, 2147483648
    %v85 = vxor.u32 %v81, 2147483648
    %v86 = vmul.f32 %v82, 1.442695
    %v87 = vpow.pop %v86
    %v88 = vmul.f32 %v83, 1.442695
    %v89 = vpow.pop %v88
    %v90 = vmul.f32 %v84, 1.442695
    %v91 = vpow.pop %v90
    %v92 = vmul.f32 %v85, 1.442695
    %v93 = vpow.pop %v92
    %v94 = vadd.f32 %v87, 1.0
    %v95 = vadd.f32 %v89, 1.0
    %v96 = vadd.f32 %v91, 1.0
    %v97 = vadd.f32 %v93, 1.0
    %v98 = vrcp.pop %v94
    %v99 = vmul.f32 1.0, %v98
    %v100 = vrcp.pop %v95
    %v101 = vmul.f32 1.0, %v100
    %v102 = vrcp.pop %v96
    %v103 = vmul.f32 1.0, %v102
    %v104 = vrcp.pop %v97
    %v105 = vmul.f32 1.0, %v104
    %v106 = vadd.f32 %v99, 1e-10
    %v107 = vadd.f32 %v101, 1e-10
    %v108 = vadd.f32 %v103, 1e-10
    %v109 = vadd.f32 %v105, 1e-10
    %v110 = vlog2.pop %v106
    %v111 = vmul.f32 %v110, 0.6931472
    %v112 = vlog2.pop %v107
    %v113 = vmul.f32 %v112, 0.6931472
    %v114 = vlog2.pop %v108
    %v115 = vmul.f32 %v114, 0.6931472
    %v116 = vlog2.pop %v109
    %v117 = vmul.f32 %v116, 0.6931472
    %v118 = vsub.f32 0.0, %v111
    %v119 = vsub.f32 0.0, %v113
    %v120 = vsub.f32 0.0, %v115
    %v121 = vsub.f32 0.0, %v117
    %v122 = vsel %vm58, %v118, 0.0
    %v123 = vsel %vm59, %v119, 0.0
    %v124 = vsel %vm60, %v120, 0.0
    %v125 = vsel %vm61, %v121, 0.0
    %v126 = vadd.f32 %v122, 0.0
    %v127 = vadd.f32 %v123, 0.0
    %v128 = vadd.f32 %v124, 0.0
    %v129 = vadd.f32 %v125, 0.0
    %v130 = vsel %vm70, %v118, 0.0
    %v131 = vsel %vm71, %v119, 0.0
    %v132 = vsel %vm72, %v120, 0.0
    %v133 = vsel %vm73, %v121, 0.0
    %v134 = vadd.f32 %v130, 0.0
    %v135 = vadd.f32 %v131, 0.0
    %v136 = vadd.f32 %v132, 0.0
    %v137 = vadd.f32 %v133, 0.0
    %v138 = vld [vmem:[#allocation2] sm:$0xff]
    %v139 = vld [vmem:[#allocation2 + $0x8] sm:$0xff]
    %v140 = vld [vmem:[#allocation2 + $0x10] sm:$0xff]
    %v141 = vld [vmem:[#allocation2 + $0x18] sm:$0xff]
    %v142 = vadd.f32 %v138, %v126
    %v143 = vadd.f32 %v139, %v127
    %v144 = vadd.f32 %v140, %v128
    %v145 = vadd.f32 %v141, %v129
    %146 = vst [vmem:[#allocation2] sm:$0xff] %v142
    %147 = vst [vmem:[#allocation2 + $0x8] sm:$0xff] %v143
    %148 = vst [vmem:[#allocation2 + $0x10] sm:$0xff] %v144
    %149 = vst [vmem:[#allocation2 + $0x18] sm:$0xff] %v145
    %v150 = vld [vmem:[#allocation3] sm:$0xff]
    %v151 = vld [vmem:[#allocation3 + $0x8] sm:$0xff]
    %v152 = vld [vmem:[#allocation3 + $0x10] sm:$0xff]
    %v153 = vld [vmem:[#allocation3 + $0x18] sm:$0xff]
    %v154 = vadd.f32 %v150, %v134
    %v155 = vadd.f32 %v151, %v135
    %v156 = vadd.f32 %v152, %v136
    %v157 = vadd.f32 %v153, %v137
    %158 = vst [vmem:[#allocation3] sm:$0xff] %v154
    %159 = vst [vmem:[#allocation3 + $0x8] sm:$0xff] %v155
    %160 = vst [vmem:[#allocation3 + $0x10] sm:$0xff] %v156
    %161 = vst [vmem:[#allocation3 + $0x18] sm:$0xff] %v157
    // Predicated region
    $region14: #{tpu_custom_call.1} parent=1 // pred_check
      %p162 = pneg %p26
    $region15: #{tpu_custom_call.1} parent=1 // pred_check_branch
      %164 = sbr.rel (%p162) target = $region17
    $region16: #{tpu_custom_call.1} parent=1 // pred_region
      %v165 = vld [vmem:[#allocation2] sm:$0xff]
      %v166 = vld [vmem:[#allocation2 + $0x8] sm:$0xff]
      %v167 = vld [vmem:[#allocation2 + $0x10] sm:$0xff]
      %v168 = vld [vmem:[#allocation2 + $0x18] sm:$0xff]
      %169 = vst [vmem:[#allocation7] sm:$0xff] %v165
      %170 = vst [vmem:[#allocation7 + $0x8] sm:$0xff] %v166
      %171 = vst [vmem:[#allocation7 + $0x10] sm:$0xff] %v167
      %172 = vst [vmem:[#allocation7 + $0x18] sm:$0xff] %v168
      %v173 = vld [vmem:[#allocation3] sm:$0xff]
      %v174 = vld [vmem:[#allocation3 + $0x8] sm:$0xff]
      %v175 = vld [vmem:[#allocation3 + $0x10] sm:$0xff]
      %v176 = vld [vmem:[#allocation3 + $0x18] sm:$0xff]
      %177 = vst [vmem:[#allocation7 + $0x20] sm:$0xff] %v173
      %178 = vst [vmem:[#allocation7 + $0x28] sm:$0xff] %v174
      %179 = vst [vmem:[#allocation7 + $0x30] sm:$0xff] %v175
      %180 = vst [vmem:[#allocation7 + $0x38] sm:$0xff] %v176
    $region17: #{tpu_custom_call.1} parent=1 // pred_fallthru
      _
    // Predicated region
    $region18: #{tpu_custom_call.1} parent=1 // pred_check
      _
    $region19: #{tpu_custom_call.1} parent=1 // pred_check_branch
      %182 = sbr.rel (0) target = $region21
    $region20: #{tpu_custom_call.1} parent=1 // pred_region
      %s184 = ssub.s32 1024, 1024
      %185 = vsyncadd [#allocation6], %s184
      %s186 = sshll.u32 [#allocation7], 4
      %s187 = int_to_ptr.vmem [resolvable:$true] %s186
      %192 = dma.vmem_to_hbm [thread:$0]  %s187, 1024, %s1, [#allocation6], 512, 512, 32
    $region21: #{tpu_custom_call.1} parent=1 // pred_fallthru
      _
    // Predicated region
    $region22: #{tpu_custom_call.1} parent=1 // pred_check
      _
    $region23: #{tpu_custom_call.1} parent=1 // pred_check_branch
      %194 = sbr.rel (0) target = $region25
    $region24: #{tpu_custom_call.1} parent=1 // pred_region
      %195 = dma.done [#allocation6], 1024
    $region25: #{tpu_custom_call.1} parent=1 // pred_fallthru
      _
    %196 = vsyncpa [#allocation5], 1
    %197 = vsyncpa [#allocation6], 1

</llo_original>
